<compile_context>
chip_gen: v6e
topology: v6e:2x2x1
jax: 0.10.0
libtpu: 0.0.40
codegen_flags: <defaults>
</compile_context>

<pallas_src>
import jax
import jax.numpy as jnp
from jax.experimental import pallas as pl
from jax.experimental.pallas import tpu as pltpu


def _round_up(x, m):
    return pl.cdiv(x, m) * m


def fashion_classifier_kernel(ids_ref, tbl_ref, bias_ref, out_ref, acc_ref):
    """Grid = (batch tiles [parallel], vocab tiles [arbitrary reduction]).

    ids_ref : (TB, S)     int32  token ids for this batch tile
    tbl_ref : (Vt, C_pad) bf16   fused ((emb @ W) / S) table tile for vocab slice k
    bias_ref: (1, C_pad)  f32    linear bias (grid-invariant)
    out_ref : (TB, C_pad) f32    logits (same block for every k -> stays resident)
    acc_ref : (TB, C_pad) f32    VMEM accumulator across vocab tiles
    """
    k = pl.program_id(1)

    @pl.when(k == 0)
    def _init():
        acc_ref[...] = jnp.zeros_like(acc_ref)

    TB, S = ids_ref.shape
    Vt = tbl_ref.shape[0]

    ids = ids_ref[...]                                               # (TB, S) int32
    # Global vocab ids covered by this table tile, on lanes.
    tok = jax.lax.broadcasted_iota(jnp.int32, (1, Vt), 1) + k * Vt   # (1, Vt)

    # counts[b, v] = #occurrences of vocab id v in row b of this batch tile.
    # Built one sequence position at a time with full (TB, Vt)-wide VPU compares
    # (S is a trace-time constant): no (TB, S, Vt) iota or intermediate is ever
    # materialized and the elementwise math stays in f32 (v5e-friendly).
    counts = jnp.zeros((TB, Vt), jnp.float32)
    for s in range(S):
        counts = counts + jnp.where(ids[:, s:s + 1] == tok, 1.0, 0.0)

    # bf16 represents integers exactly only up to 256; keep counts f32 for longer seqs.
    dot_dtype = jnp.bfloat16 if S <= 256 else jnp.float32

    # One MXU matmul per (batch tile, vocab tile) against the fused table; f32 accum.
    acc_ref[...] += jnp.dot(counts.astype(dot_dtype), tbl_ref[...],
                            preferred_element_type=jnp.float32)

    @pl.when(k == pl.num_programs(1) - 1)
    def _finalize():
        out_ref[...] = acc_ref[...] + bias_ref[...]


def prepare_fashion_classifier(emb_table, w, b, seq_len, *,
                               v_tile=512, table_dtype=jnp.bfloat16):
    """One-time weight preprocessing (hoist out of the per-call path and cache).

    Fuses embedding and linear weights into a single (V_pad, C_pad) table with the
    1/seq_len mean folded in, zeroes row 0 (padding_idx=0 semantics), and pads to
    lane-dense widths.  Pass table_dtype=jnp.float32 for tighter parity with a pure-f32
    reference (2x table VMEM / MXU passes).
    """
    V, E = emb_table.shape
    E2, C = w.shape
    assert E == E2, (E, E2)
    C_pad = _round_up(C, 128)

    # padding_idx=0: nn.Embedding guarantees row 0 stays zero; enforce it here so
    # padding tokens (and padded batch rows) contribute exactly zero to the mean.
    emb = emb_table.astype(jnp.float32).at[0].set(0.0)
    combined = (emb @ w.astype(jnp.float32)) * (1.0 / float(seq_len))     # (V, C)

    # Vocab tile: multiple of 8 sublanes (256-multiples fill the v6e/v7x MXU depth);
    # pad V so the tile divides it. Padded rows are zero and never match a real id.
    v_tile = max(8, min(_round_up(V, 8), int(v_tile)))
    v_tile = _round_up(v_tile, 8)
    V_pad = _round_up(V, v_tile)

    tbl = jnp.zeros((V_pad, C_pad), jnp.float32).at[:V, :C].set(combined)
    tbl = tbl.astype(table_dtype)
    bias = jnp.zeros((1, C_pad), jnp.float32).at[0, :C].set(jnp.reshape(b, (-1,)))
    return dict(tbl=tbl, bias=bias, v_tile=v_tile, num_class=C)


def fashion_classifier_apply(text, *, tbl, bias, v_tile, num_class, batch_tile=None):
    """text: (B, S) int token ids -> logits (B, num_class) f32."""
    B, S = text.shape
    V_pad, C_pad = tbl.shape

    if batch_tile is None:
        # Large tiles fill MXU rows and amortize per-step grid overhead, but keep >=2
        # tiles on the "parallel" batch axis (when B allows) so v7x's second TensorCore
        # gets work.  Always a multiple of 8 (sublane tile).
        batch_tile = min(256, _round_up(max(8, pl.cdiv(B, 2)), 8))
    B_pad = _round_up(B, batch_tile)

    # Dense (B_pad, S) ids with S on lanes.  Padded batch rows hold token 0, whose
    # fused-table row is zero, so they only ever see the bias and are sliced off below.
    ids = jnp.zeros((B_pad, S), jnp.int32).at[:B].set(text.astype(jnp.int32))

    grid = (B_pad // batch_tile, V_pad // v_tile)

    # NOTE: with the vocab axis tiled, the streamed table block *wants* the default
    # double-buffering (hides its DMA under the matmul); the only grid-invariant block
    # left is the tiny (1, C_pad) bias, so single-buffering it would save ~512 B only.
    out = pl.pallas_call(
        fashion_classifier_kernel,
        out_shape=jax.ShapeDtypeStruct((B_pad, C_pad), jnp.float32),
        grid=grid,
        in_specs=[
            pl.BlockSpec((batch_tile, S), lambda i, k: (i, 0)),      # ids tile
            pl.BlockSpec((v_tile, C_pad), lambda i, k: (k, 0)),      # streamed table tile
            pl.BlockSpec((1, C_pad), lambda i, k: (0, 0)),           # bias
        ],
        out_specs=pl.BlockSpec((batch_tile, C_pad), lambda i, k: (i, 0)),
        scratch_shapes=[pltpu.VMEM((batch_tile, C_pad), jnp.float32)],
        compiler_params=pltpu.CompilerParams(
            dimension_semantics=("parallel", "arbitrary")),
    )(ids, tbl, bias)

    return out[:B, :num_class]


def fashion_classifier(text, emb_table, w, b, **kwargs):
    """One-shot convenience wrapper.  For repeated calls, run prepare_* once and reuse."""
    params = prepare_fashion_classifier(emb_table, w, b, seq_len=text.shape[1])
    return fashion_classifier_apply(text, **params, **kwargs)


if __name__ == "__main__":
    # Small shapes consistent with the module.
    vocab_size, embed_dim, num_class = 32, 32, 8
    batch, seq = 2, 8

    key = jax.random.PRNGKey(0)
    k_emb, k_w, k_b, k_ids = jax.random.split(key, 4)

    # nn.Embedding(vocab_size, embed_dim, padding_idx=0): N(0,1) init, row 0 zeroed.
    emb_table = jax.random.normal(k_emb, (vocab_size, embed_dim), jnp.float32)
    emb_table = emb_table.at[0].set(0.0)

    # nn.Linear(embed_dim, num_class): U(-1/sqrt(E), 1/sqrt(E)); stored as (E, C).
    bound = 1.0 / (embed_dim ** 0.5)
    w = jax.random.uniform(k_w, (embed_dim, num_class), jnp.float32, -bound, bound)
    b = jax.random.uniform(k_b, (1, num_class), jnp.float32, -bound, bound)

    text = jax.random.randint(k_ids, (batch, seq), 0, vocab_size, dtype=jnp.int32)

    # Hoisted weight prep (done once), then the Pallas forward.
    params = prepare_fashion_classifier(emb_table, w, b, seq_len=seq)
    out = jax.block_until_ready(fashion_classifier_apply(text, **params))

    # Reference: embedding gather, mean over seq (incl. padding positions), linear (f32).
    ref = jnp.take(emb_table, text, axis=0).mean(axis=1) @ w + b
    assert out.shape == (batch, num_class), out.shape
    # bf16 fused table => relaxed tolerance vs the pure-f32 reference.
    assert jnp.allclose(out, ref, atol=2e-2, rtol=2e-2), (out, ref)

    print("KERNEL_OK")
</pallas_src>

<mosaic_0001>
module attributes {stable_mosaic.version = 11 : i64} {
  func.func @fashion_classifier_kernel(%arg0: i32, %arg1: i32, %arg2: memref<8x8xi32, #tpu.memory_space<vmem>>, %arg3: memref<32x128xbf16, #tpu.memory_space<vmem>>, %arg4: memref<1x128xf32, #tpu.memory_space<vmem>>, %arg5: memref<8x128xf32, #tpu.memory_space<vmem>>, %arg6: memref<8x128xf32, #tpu.memory_space<vmem>>) attributes {dimension_semantics = [#tpu.dimension_semantics<parallel>, #tpu.dimension_semantics<arbitrary>], iteration_bounds = array<i64: 1, 1>, scalar_prefetch = 0 : i64, scratch_operands = 1 : i64, tpu.core_type = #tpu.core_type<tc>, window_params = [{transform_indices = @transform_0, window_bounds = array<i64: 8, 8>}, {transform_indices = @transform_1, window_bounds = array<i64: 32, 128>}, {pipeline_mode = #tpu.pipeline_mode<synchronous>, transform_indices = @transform_2, window_bounds = array<i64: 1, 128>}, {transform_indices = @transform_3, window_bounds = array<i64: 8, 128>}]} {
    %c0_i32 = arith.constant 0 : i32
    %0 = arith.cmpi eq, %arg1, %c0_i32 : i32
    %1 = arith.extui %0 : i1 to i32
    %c0_i32_0 = arith.constant 0 : i32
    %2 = arith.cmpi ne, %1, %c0_i32_0 : i32
    scf.if %2 {
      %cst_27 = arith.constant 0.000000e+00 : f32
      %82 = vector.broadcast %cst_27 : f32 to vector<8x128xf32>
      %c0_28 = arith.constant 0 : index
      %c0_29 = arith.constant 0 : index
      %83 = vector.load %arg6[%c0_28, %c0_29] : memref<8x128xf32, #tpu.memory_space<vmem>>, vector<8x128xf32>
      tpu.vector_store %arg6[%c0_28, %c0_29], %82 {strides = array<i32>} : memref<8x128xf32, #tpu.memory_space<vmem>>, vector<8x128xf32>,
    } else {
    }
    %c0 = arith.constant 0 : index
    %c0_1 = arith.constant 0 : index
    %3 = vector.load %arg2[%c0, %c0_1] : memref<8x8xi32, #tpu.memory_space<vmem>>, vector<8x8xi32>
    %4 = tpu.iota {dimensions = array<i32: 1>} : vector<1x32xi32>
    %c32_i32 = arith.constant 32 : i32
    %5 = arith.muli %arg1, %c32_i32 : i32
    %6 = vector.broadcast %5 : i32 to vector<1x32xi32>
    %7 = arith.addi %4, %6 : vector<1x32xi32>
    %cst = arith.constant 0.000000e+00 : f32
    %8 = vector.broadcast %cst : f32 to vector<8x32xf32>
    %9 = vector.extract_strided_slice %3 {offsets = [0, 0], sizes = [8, 1], strides = [1, 1]} : vector<8x8xi32> to vector<8x1xi32>
    %10 = vector.broadcast %9 : vector<8x1xi32> to vector<8x32xi32>
    %11 = vector.broadcast %7 : vector<1x32xi32> to vector<8x32xi32>
    %12 = arith.cmpi eq, %10, %11 : vector<8x32xi32>
    %cst_2 = arith.constant 1.000000e+00 : f32
    %cst_3 = arith.constant 0.000000e+00 : f32
    %13 = vector.broadcast %cst_2 : f32 to vector<8x32xf32>
    %14 = vector.broadcast %cst_3 : f32 to vector<8x32xf32>
    %15 = arith.select %12, %13, %14 : vector<8x32xi1>, vector<8x32xf32>
    %16 = arith.addf %8, %15 : vector<8x32xf32>
    %17 = vector.extract_strided_slice %3 {offsets = [0, 1], sizes = [8, 1], strides = [1, 1]} : vector<8x8xi32> to vector<8x1xi32>
    %18 = vector.broadcast %17 : vector<8x1xi32> to vector<8x32xi32>
    %19 = vector.broadcast %7 : vector<1x32xi32> to vector<8x32xi32>
    %20 = arith.cmpi eq, %18, %19 : vector<8x32xi32>
    %cst_4 = arith.constant 1.000000e+00 : f32
    %cst_5 = arith.constant 0.000000e+00 : f32
    %21 = vector.broadcast %cst_4 : f32 to vector<8x32xf32>
    %22 = vector.broadcast %cst_5 : f32 to vector<8x32xf32>
    %23 = arith.select %20, %21, %22 : vector<8x32xi1>, vector<8x32xf32>
    %24 = arith.addf %16, %23 : vector<8x32xf32>
    %25 = vector.extract_strided_slice %3 {offsets = [0, 2], sizes = [8, 1], strides = [1, 1]} : vector<8x8xi32> to vector<8x1xi32>
    %26 = vector.broadcast %25 : vector<8x1xi32> to vector<8x32xi32>
    %27 = vector.broadcast %7 : vector<1x32xi32> to vector<8x32xi32>
    %28 = arith.cmpi eq, %26, %27 : vector<8x32xi32>
    %cst_6 = arith.constant 1.000000e+00 : f32
    %cst_7 = arith.constant 0.000000e+00 : f32
    %29 = vector.broadcast %cst_6 : f32 to vector<8x32xf32>
    %30 = vector.broadcast %cst_7 : f32 to vector<8x32xf32>
    %31 = arith.select %28, %29, %30 : vector<8x32xi1>, vector<8x32xf32>
    %32 = arith.addf %24, %31 : vector<8x32xf32>
    %33 = vector.extract_strided_slice %3 {offsets = [0, 3], sizes = [8, 1], strides = [1, 1]} : vector<8x8xi32> to vector<8x1xi32>
    %34 = vector.broadcast %33 : vector<8x1xi32> to vector<8x32xi32>
    %35 = vector.broadcast %7 : vector<1x32xi32> to vector<8x32xi32>
    %36 = arith.cmpi eq, %34, %35 : vector<8x32xi32>
    %cst_8 = arith.constant 1.000000e+00 : f32
    %cst_9 = arith.constant 0.000000e+00 : f32
    %37 = vector.broadcast %cst_8 : f32 to vector<8x32xf32>
    %38 = vector.broadcast %cst_9 : f32 to vector<8x32xf32>
    %39 = arith.select %36, %37, %38 : vector<8x32xi1>, vector<8x32xf32>
    %40 = arith.addf %32, %39 : vector<8x32xf32>
    %41 = vector.extract_strided_slice %3 {offsets = [0, 4], sizes = [8, 1], strides = [1, 1]} : vector<8x8xi32> to vector<8x1xi32>
    %42 = vector.broadcast %41 : vector<8x1xi32> to vector<8x32xi32>
    %43 = vector.broadcast %7 : vector<1x32xi32> to vector<8x32xi32>
    %44 = arith.cmpi eq, %42, %43 : vector<8x32xi32>
    %cst_10 = arith.constant 1.000000e+00 : f32
    %cst_11 = arith.constant 0.000000e+00 : f32
    %45 = vector.broadcast %cst_10 : f32 to vector<8x32xf32>
    %46 = vector.broadcast %cst_11 : f32 to vector<8x32xf32>
    %47 = arith.select %44, %45, %46 : vector<8x32xi1>, vector<8x32xf32>
    %48 = arith.addf %40, %47 : vector<8x32xf32>
    %49 = vector.extract_strided_slice %3 {offsets = [0, 5], sizes = [8, 1], strides = [1, 1]} : vector<8x8xi32> to vector<8x1xi32>
    %50 = vector.broadcast %49 : vector<8x1xi32> to vector<8x32xi32>
    %51 = vector.broadcast %7 : vector<1x32xi32> to vector<8x32xi32>
    %52 = arith.cmpi eq, %50, %51 : vector<8x32xi32>
    %cst_12 = arith.constant 1.000000e+00 : f32
    %cst_13 = arith.constant 0.000000e+00 : f32
    %53 = vector.broadcast %cst_12 : f32 to vector<8x32xf32>
    %54 = vector.broadcast %cst_13 : f32 to vector<8x32xf32>
    %55 = arith.select %52, %53, %54 : vector<8x32xi1>, vector<8x32xf32>
    %56 = arith.addf %48, %55 : vector<8x32xf32>
    %57 = vector.extract_strided_slice %3 {offsets = [0, 6], sizes = [8, 1], strides = [1, 1]} : vector<8x8xi32> to vector<8x1xi32>
    %58 = vector.broadcast %57 : vector<8x1xi32> to vector<8x32xi32>
    %59 = vector.broadcast %7 : vector<1x32xi32> to vector<8x32xi32>
    %60 = arith.cmpi eq, %58, %59 : vector<8x32xi32>
    %cst_14 = arith.constant 1.000000e+00 : f32
    %cst_15 = arith.constant 0.000000e+00 : f32
    %61 = vector.broadcast %cst_14 : f32 to vector<8x32xf32>
    %62 = vector.broadcast %cst_15 : f32 to vector<8x32xf32>
    %63 = arith.select %60, %61, %62 : vector<8x32xi1>, vector<8x32xf32>
    %64 = arith.addf %56, %63 : vector<8x32xf32>
    %65 = vector.extract_strided_slice %3 {offsets = [0, 7], sizes = [8, 1], strides = [1, 1]} : vector<8x8xi32> to vector<8x1xi32>
    %66 = vector.broadcast %65 : vector<8x1xi32> to vector<8x32xi32>
    %67 = vector.broadcast %7 : vector<1x32xi32> to vector<8x32xi32>
    %68 = arith.cmpi eq, %66, %67 : vector<8x32xi32>
    %cst_16 = arith.constant 1.000000e+00 : f32
    %cst_17 = arith.constant 0.000000e+00 : f32
    %69 = vector.broadcast %cst_16 : f32 to vector<8x32xf32>
    %70 = vector.broadcast %cst_17 : f32 to vector<8x32xf32>
    %71 = arith.select %68, %69, %70 : vector<8x32xi1>, vector<8x32xf32>
    %72 = arith.addf %64, %71 : vector<8x32xf32>
    %c0_18 = arith.constant 0 : index
    %c0_19 = arith.constant 0 : index
    %73 = vector.load %arg6[%c0_18, %c0_19] : memref<8x128xf32, #tpu.memory_space<vmem>>, vector<8x128xf32>
    %74 = arith.truncf %72 : vector<8x32xf32> to vector<8x32xbf16>
    %c0_20 = arith.constant 0 : index
    %c0_21 = arith.constant 0 : index
    %75 = vector.load %arg3[%c0_20, %c0_21] : memref<32x128xbf16, #tpu.memory_space<vmem>>, vector<32x128xbf16>
    %cst_22 = arith.constant dense<0.000000e+00> : vector<8x128xf32>
    %76 = tpu.matmul %74, %75, %cst_22 {dimension_numbers = #tpu.dot_dimension_numbers<[1], [0], [0], [1], [0, 0, 1, 1], [], []>} : vector<8x32xbf16>, vector<32x128xbf16>, vector<8x128xf32> -> vector<8x128xf32>
    %77 = arith.addf %73, %76 : vector<8x128xf32>
    %c0_23 = arith.constant 0 : index
    %c0_24 = arith.constant 0 : index
    %78 = vector.load %arg6[%c0_23, %c0_24] : memref<8x128xf32, #tpu.memory_space<vmem>>, vector<8x128xf32>
    tpu.vector_store %arg6[%c0_23, %c0_24], %77 {strides = array<i32>} : memref<8x128xf32, #tpu.memory_space<vmem>>, vector<8x128xf32>,
    %c0_i32_25 = arith.constant 0 : i32
    %79 = arith.cmpi eq, %arg1, %c0_i32_25 : i32
    %80 = arith.extui %79 : i1 to i32
    %c0_i32_26 = arith.constant 0 : i32
    %81 = arith.cmpi ne, %80, %c0_i32_26 : i32
    scf.if %81 {
      %c0_27 = arith.constant 0 : index
      %c0_28 = arith.constant 0 : index
      %82 = vector.load %arg6[%c0_27, %c0_28] : memref<8x128xf32, #tpu.memory_space<vmem>>, vector<8x128xf32>
      %c0_29 = arith.constant 0 : index
      %c0_30 = arith.constant 0 : index
      %83 = vector.load %arg4[%c0_29, %c0_30] : memref<1x128xf32, #tpu.memory_space<vmem>>, vector<1x128xf32>
      %84 = vector.broadcast %83 : vector<1x128xf32> to vector<8x128xf32>
      %85 = arith.addf %82, %84 : vector<8x128xf32>
      %c0_31 = arith.constant 0 : index
      %c0_32 = arith.constant 0 : index
      %86 = vector.load %arg5[%c0_31, %c0_32] : memref<8x128xf32, #tpu.memory_space<vmem>>, vector<8x128xf32>
      tpu.vector_store %arg5[%c0_31, %c0_32], %85 {strides = array<i32>} : memref<8x128xf32, #tpu.memory_space<vmem>>, vector<8x128xf32>,
    } else {
    }
    return
  }
  func.func @transform_0(%arg0: i32, %arg1: i32) -> (i32, i32) {
    %c0_i32 = arith.constant 0 : i32
    %c0_i32_0 = arith.constant 0 : i32
    return %arg0, %c0_i32 : i32, i32
  }
  func.func @transform_1(%arg0: i32, %arg1: i32) -> (i32, i32) {
    %c0_i32 = arith.constant 0 : i32
    %c0_i32_0 = arith.constant 0 : i32
    return %arg1, %c0_i32 : i32, i32
  }
  func.func @transform_2(%arg0: i32, %arg1: i32) -> (i32, i32) {
    %c0_i32 = arith.constant 0 : i32
    %c0_i32_0 = arith.constant 0 : i32
    %c0_i32_1 = arith.constant 0 : i32
    return %c0_i32, %c0_i32_0 : i32, i32
  }
  func.func @transform_3(%arg0: i32, %arg1: i32) -> (i32, i32) {
    %c0_i32 = arith.constant 0 : i32
    %c0_i32_0 = arith.constant 0 : i32
    return %arg0, %c0_i32 : i32, i32
  }
}

</mosaic_0001>

<llo_original>
// kernel: tpu_custom_call.1
$region0: #{tpu_custom_call.1}
  #allocation0 [shape = 'u32[]', space=smem, size = 0x4, offset = 0x4, fixed_abs, tag = 'smem constant byte address 0x4 - core index']
  #allocation1 [shape = 'u32[144,128]{1,0:T(1,128)}', space=vmem, size = 0x12000, scoped, tag = 'internal scratch']
  #allocation2 [shape = 'f32[8,128]{1,0:T(8,128)}', space=vmem, size = 0x1000, scoped, tag = 'scratch operand']
  %s0 = inlined_call_operand.hbm [shape: s32[8,8], index: 0, kind: input, shape index: {}]
  %s1 = inlined_call_operand.hbm [shape: bf16[32,128], index: 1, kind: input, shape index: {}]
  %s2 = inlined_call_operand.vmem [shape: f32[1,128], index: 2, kind: input, shape index: {}]
  %s3 = inlined_call_operand.hbm [shape: f32[8,128], index: 3, kind: output, shape index: {}]
  %s4 = sld [smem:[#allocation0]]
  $region38: #{tpu_custom_call.1} parent=0
    _
  %s6 = ssub.s32 1, %s4
  %s7 = scalar_select 0, %s6, %s4
  $region1: #{tpu_custom_call.1} parent=0
    #allocation3 [shape = 'u8[4096]{0}', space=vmem, size = 0x1000, scoped, tag = 'input window, operand 0, single buffered']
    #allocation4 [shape = 's32[1]{0}', space=sflag, size = 0x4, scoped, tag = 'scoped memory for tpu_custom_call.1']
    #allocation5 [shape = 's32[1]{0}', space=sflag, size = 0x4, scoped, tag = 'scoped memory for tpu_custom_call.1']
    #allocation6 [shape = 'u8[8192]{0}', space=vmem, size = 0x2000, scoped, tag = 'input window, operand 1, single buffered']
    #allocation7 [shape = 's32[1]{0}', space=sflag, size = 0x4, scoped, tag = 'scoped memory for tpu_custom_call.1']
    #allocation8 [shape = 'u8[4096]{0}', space=vmem, size = 0x1000, scoped, tag = 'output window, operand 0, single buffered']
    %8 = vsyncpa [#allocation4], 0
    %9 = vsyncpa [#allocation7], 0
    %10 = vsyncpa [#allocation5], 0
    // Predicated region
    $region2: #{tpu_custom_call.1} parent=1 // pred_check
      _
    $region3: #{tpu_custom_call.1} parent=1 // pred_check_branch
      %12 = sbr.rel (0) target = $region5
    $region4: #{tpu_custom_call.1} parent=1 // pred_region
      %s14 = ssub.s32 128, 128
      %15 = vsyncadd [#allocation4], %s14
      %s17 = sshll.u32 [#allocation3], 4
      %s18 = int_to_ptr.vmem [resolvable:$true] %s17
      %20 = dma.hbm_to_vmem [thread:$0]  %s0, 128, %s18, [#allocation4]
    $region5: #{tpu_custom_call.1} parent=1 // pred_fallthru
      _
    // Predicated region
    $region6: #{tpu_custom_call.1} parent=1 // pred_check
      _
    $region7: #{tpu_custom_call.1} parent=1 // pred_check_branch
      %22 = sbr.rel (0) target = $region9
    $region8: #{tpu_custom_call.1} parent=1 // pred_region
      %s24 = ssub.s32 256, 256
      %25 = vsyncadd [#allocation7], %s24
      %s26 = sshll.u32 [#allocation6], 4
      %s27 = int_to_ptr.vmem [resolvable:$true] %s26
      %32 = dma.hbm_to_vmem [thread:$0]  %s1, 256, %s27, [#allocation7], 64, 64, 4
    $region9: #{tpu_custom_call.1} parent=1 // pred_fallthru
      _
    // Predicated region
    $region10: #{tpu_custom_call.1} parent=1 // pred_check
      _
    $region11: #{tpu_custom_call.1} parent=1 // pred_check_branch
      %34 = sbr.rel (0) target = $region13
    $region12: #{tpu_custom_call.1} parent=1 // pred_region
      _
    $region13: #{tpu_custom_call.1} parent=1 // pred_fallthru
      _
    // Predicated region
    $region14: #{tpu_custom_call.1} parent=1 // pred_check
      _
    $region15: #{tpu_custom_call.1} parent=1 // pred_check_branch
      %36 = sbr.rel (0) target = $region17
    $region16: #{tpu_custom_call.1} parent=1 // pred_region
      %37 = dma.done [#allocation4], 128
    $region17: #{tpu_custom_call.1} parent=1 // pred_fallthru
      _
    // Predicated region
    $region18: #{tpu_custom_call.1} parent=1 // pred_check
      _
    $region19: #{tpu_custom_call.1} parent=1 // pred_check_branch
      %39 = sbr.rel (0) target = $region21
    $region20: #{tpu_custom_call.1} parent=1 // pred_region
      %40 = dma.done [#allocation7], 256
    $region21: #{tpu_custom_call.1} parent=1 // pred_fallthru
      _
    %p42 = scmp.eq.s32.totalorder 0, 0
    // Predicated region
    $region22: #{tpu_custom_call.1} parent=1 // pred_check
      %p43 = pneg %p42
    $region23: #{tpu_custom_call.1} parent=1 // pred_check_branch
      %45 = sbr.rel (%p43) target = $region25
    $region24: #{tpu_custom_call.1} parent=1 // pred_region
      %46 = vst [vmem:[#allocation2] sm:$0xff] 0.0
    $region25: #{tpu_custom_call.1} parent=1 // pred_fallthru
      _
    %v47 = vld [vmem:[#allocation3] sm:$0xff]
    %v48 = vlaneseq
    %v49 = vand.u32 %v48, 127
    %s50 = smul.u32 0, 32
    %v51 = vstv %s50
    %v52 = vadd.s32 %v49, %v51
    %53 = vset.pattern.permute.xlu0 0
    %54 = vperm.xlu0 %53, %v47
    %v55 = vpop.permute.xlu0 %54
    %vm56 = vcmp.eq.s32.totalorder %v55, %v52
    %v57 = vsel %vm56, 1.0, 0.0
    %v58 = vadd.f32 %v57, 0.0
    %59 = vset.pattern.permute.xlu0 1
    %60 = vperm.xlu0 %59, %v47
    %v61 = vpop.permute.xlu0 %60
    %vm62 = vcmp.eq.s32.totalorder %v61, %v52
    %v63 = vsel %vm62, 1.0, 0.0
    %v64 = vadd.f32 %v58, %v63
    %65 = vset.pattern.permute.xlu0 2
    %66 = vperm.xlu0 %65, %v47
    %v67 = vpop.permute.xlu0 %66
    %vm68 = vcmp.eq.s32.totalorder %v67, %v52
    %v69 = vsel %vm68, 1.0, 0.0
    %v70 = vadd.f32 %v64, %v69
    %71 = vset.pattern.permute.xlu0 3
    %72 = vperm.xlu0 %71, %v47
    %v73 = vpop.permute.xlu0 %72
    %vm74 = vcmp.eq.s32.totalorder %v73, %v52
    %v75 = vsel %vm74, 1.0, 0.0
    %v76 = vadd.f32 %v70, %v75
    %77 = vset.pattern.permute.xlu0 4
    %78 = vperm.xlu0 %77, %v47
    %v79 = vpop.permute.xlu0 %78
    %vm80 = vcmp.eq.s32.totalorder %v79, %v52
    %v81 = vsel %vm80, 1.0, 0.0
    %v82 = vadd.f32 %v76, %v81
    %83 = vset.pattern.permute.xlu0 5
    %84 = vperm.xlu0 %83, %v47
    %v85 = vpop.permute.xlu0 %84
    %vm86 = vcmp.eq.s32.totalorder %v85, %v52
    %v87 = vsel %vm86, 1.0, 0.0
    %v88 = vadd.f32 %v82, %v87
    %89 = vset.pattern.permute.xlu0 6
    %90 = vperm.xlu0 %89, %v47
    %v91 = vpop.permute.xlu0 %90
    %vm92 = vcmp.eq.s32.totalorder %v91, %v52
    %v93 = vsel %vm92, 1.0, 0.0
    %v94 = vadd.f32 %v88, %v93
    %95 = vset.pattern.permute.xlu0 7
    %96 = vperm.xlu0 %95, %v47
    %v97 = vpop.permute.xlu0 %96
    %vm98 = vcmp.eq.s32.totalorder %v97, %v52
    %v99 = vsel %vm98, 1.0, 0.0
    %v100 = vadd.f32 %v94, %v99
    %v101 = vld [vmem:[#allocation2] sm:$0xff]
    %v102 = vpack.c.bf16 %v100, %v100
    %v103 = vld [vmem:[#allocation6] sm:$0xf]
    %v104 = vld [vmem:[#allocation6 + $0x4] sm:$0xf]
    %v105 = vld [vmem:[#allocation6 + $0x8] sm:$0xf]
    %v106 = vld [vmem:[#allocation6 + $0xc] sm:$0xf]
    %v111 = vunpack.c.l.b16 %v103
    %v112 = vunpack.c.l.b16 %v104
    %v113 = vunpack.c.l.b16 %v105
    %v114 = vunpack.c.l.b16 %v106
    %v115 = vpack.c.b16 %v112, %v111
    %v116 = vpack.c.b16 %v114, %v113
    %vm119 = vcmask 261120
    %v121 = vsel %vm119, %v102, 0
    %123 = vmatprep.subr.bf16.mxu0 0
    %124 = vmatpush1.bf16.msra.mxu0 0
    %125 = vmatprep.subr.bf16.mxu0 0
    %126 = vmatpush1.bf16.msra.mxu0 0
    %127 = vmatprep.subr.bf16.mxu0 0
    %128 = vmatpush1.bf16.msra.mxu0 0
    %129 = vmatprep.subr.bf16.mxu0 0
    %130 = vmatpush1.bf16.msra.mxu0 0
    %131 = vmatprep.subr.bf16.mxu0 0
    %132 = vmatpush1.bf16.msra.mxu0 0
    %133 = vmatprep.subr.bf16.mxu0 0
    %134 = vmatpush1.bf16.msra.mxu0 0
    %135 = vmatprep.subr.bf16.mxu0 0
    %136 = vmatpush1.bf16.msra.mxu0 %v116
    %137 = vmatprep.subr.bf16.mxu0 0
    %138 = vmatpush1.bf16.msra.mxu0 %v115
    %139 = vmatprep.subr.bf16.mxu0 0
    %140 = vmatpush2.bf16.msra.mxu0 0
    %141 = vmatprep.subr.bf16.mxu0 0
    %142 = vmatpush2.bf16.msra.mxu0 0
    %143 = vmatprep.subr.bf16.mxu0 0
    %144 = vmatpush2.bf16.msra.mxu0 0
    %145 = vmatprep.subr.bf16.mxu0 0
    %146 = vmatpush2.bf16.msra.mxu0 0
    %147 = vmatprep.subr.bf16.mxu0 0
    %148 = vmatpush2.bf16.msra.mxu0 0
    %149 = vmatprep.subr.bf16.mxu0 0
    %150 = vmatpush2.bf16.msra.mxu0 0
    %151 = vmatprep.subr.bf16.mxu0 0
    %152 = vmatpush2.bf16.msra.mxu0 0
    %153 = vmatprep.subr.bf16.mxu0 0
    %154 = vmatpush2.bf16.msra.mxu0 0
    %155 = vmatprep.mubr.bf16.mxu0 0
    %156 = vmatmul.mubr.bf16.gmra.mxu0 %v121
    %v157 = vpop.f32.mrf.mxu0
    %v158 = vadd.f32 0.0, %v157
    %v159 = vpop.f32.mrf.mxu0
    %v160 = vpop.f32.mrf.mxu0
    %v161 = vpop.f32.mrf.mxu0
    %162 = vdwg.mxu0
    %v163 = vadd.f32 %v101, %v158
    %164 = vst [vmem:[#allocation2] sm:$0xff] %v163
    // Predicated region
    $region26: #{tpu_custom_call.1} parent=1 // pred_check
      %p165 = pneg %p42
    $region27: #{tpu_custom_call.1} parent=1 // pred_check_branch
      %167 = sbr.rel (%p165) target = $region29
    $region28: #{tpu_custom_call.1} parent=1 // pred_region
      %v168 = vld [vmem:[#allocation2] sm:$0xff]
      %v169 = vld [vmem:[%s2] sm:$0x1]
      %v171 = vlaneseq
      %v172 = vshrl.u32 %v171, 7
      %v173 = vsub.s32 0, %v172
      %v174 = vrot.slane %v169, %v173
      %v176 = vadd.f32 %v168, %v174
      %177 = vst [vmem:[#allocation8] sm:$0xff] %v176
    $region29: #{tpu_custom_call.1} parent=1 // pred_fallthru
      _
    // Predicated region
    $region30: #{tpu_custom_call.1} parent=1 // pred_check
      _
    $region31: #{tpu_custom_call.1} parent=1 // pred_check_branch
      %179 = sbr.rel (0) target = $region33
    $region32: #{tpu_custom_call.1} parent=1 // pred_region
      %s181 = ssub.s32 128, 128
      %182 = vsyncadd [#allocation5], %s181
      %s184 = sshll.u32 [#allocation8], 4
      %s185 = int_to_ptr.vmem [resolvable:$true] %s184
      %187 = dma.vmem_to_hbm [thread:$0]  %s185, 128, %s3, [#allocation5]
    $region33: #{tpu_custom_call.1} parent=1 // pred_fallthru
      _
    // Predicated region
    $region34: #{tpu_custom_call.1} parent=1 // pred_check
      _
    $region35: #{tpu_custom_call.1} parent=1 // pred_check_branch
      %189 = sbr.rel (0) target = $region37
    $region36: #{tpu_custom_call.1} parent=1 // pred_region
      %190 = dma.done [#allocation5], 128
    $region37: #{tpu_custom_call.1} parent=1 // pred_fallthru
      _
    %191 = vsyncpa [#allocation4], 1
    %192 = vsyncpa [#allocation7], 1
    %193 = vsyncpa [#allocation5], 1

</llo_original>
